<compile_context>
chip_gen: v7x
topology: tpu7x:2x2x1
jax: 0.10.0
libtpu: 0.0.40
codegen_flags: <defaults>
</compile_context>

<pallas_src>
import jax
import jax.numpy as jnp
import numpy as np
from jax.experimental import pallas as pl
from jax.experimental.pallas import tpu as pltpu


# ---------------------------------------------------------------------------
# Kernel 1: hoisted input projection for both directions (one big MXU matmul)
#   X2 (T*B, E) @ W (E, 6H) + b (1, 6H) -> GI (T*B, 6H)
# ---------------------------------------------------------------------------
def _input_proj_kernel(x_ref, w_ref, b_ref, o_ref):
    o_ref[...] = (jnp.dot(x_ref[...], w_ref[...],
                          preferred_element_type=jnp.float32) + b_ref[...])


def _pick_row_block(n, target=512):
    """Largest row block <= target that is a multiple of 8 and divides n."""
    if n <= target:
        return n
    for rb in range(target - (target % 8), 7, -8):
        if n % rb == 0:
            return rb
    return n


def input_projection(x2, w, b):
    R, E = x2.shape
    G = w.shape[1]
    rb = _pick_row_block(R)
    return pl.pallas_call(
        _input_proj_kernel,
        out_shape=jax.ShapeDtypeStruct((R, G), jnp.float32),
        grid_spec=pltpu.PrefetchScalarGridSpec(
            num_scalar_prefetch=0,
            grid=(R // rb,),
            in_specs=[
                pl.BlockSpec((rb, E), lambda i: (i, 0)),
                pl.BlockSpec((E, G), lambda i: (0, 0)),
                pl.BlockSpec((1, G), lambda i: (0, 0)),
            ],
            out_specs=pl.BlockSpec((rb, G), lambda i: (i, 0)),
        ),
        compiler_params=pltpu.CompilerParams(
            dimension_semantics=("parallel",)),
    )(x2, w, b)


# ---------------------------------------------------------------------------
# Kernel 2: fused bidirectional GRU recurrence + attention + weighted pooling
#   grid=(1,): the T loop runs inside the kernel over VMEM-resident state.
# ---------------------------------------------------------------------------
def _bigru_attn_kernel(gi_ref, mask_ref,
                       whhT_f_ref, whhT_b_ref, bhn_f_ref, bhn_b_ref,
                       wattT_f_ref, wattT_b_ref, b_att_ref, usw_ref, usb_ref,
                       out_ref,
                       h_f, h_b, of_scr, ob_scr, acc_f, acc_b):
    T = of_scr.shape[0]
    H = h_f.shape[-1]

    h_f[...] = jnp.zeros_like(h_f)
    h_b[...] = jnp.zeros_like(h_b)
    acc_f[...] = jnp.zeros_like(acc_f)
    acc_b[...] = jnp.zeros_like(acc_b)

    def gru_cell(gi, gh, b_hn, h_prev, m):
        # gi already contains b_ih (+ b_hh for the r/z gates); gh has no bias.
        r = jax.nn.sigmoid(gi[:, 0:H] + gh[:, 0:H])
        z = jax.nn.sigmoid(gi[:, H:2 * H] + gh[:, H:2 * H])
        n = jnp.tanh(gi[:, 2 * H:3 * H] + r * (gh[:, 2 * H:3 * H] + b_hn))
        h_new = (1.0 - z) * n + z * h_prev
        # packed-sequence semantics: padded steps keep the previous hidden
        # state and emit exactly-zero output.
        h_next = m * h_new + (1.0 - m) * h_prev
        return h_next, m * h_next

    # ------- recurrence: forward (time t) and backward (time T-1-t) fused ----
    @pl.loop(0, T)
    def _(t):
        rt = T - 1 - t

        gi_t = gi_ref[t]          # (B, 6H): [:, :3H] forward gates at time t
        gi_rt = gi_ref[rt]        # (B, 6H): [:, 3H:] backward gates at time rt
        m_t = mask_ref[t]         # (B, 1)
        m_rt = mask_ref[rt]       # (B, 1)

        gh_f = jnp.dot(h_f[...], whhT_f_ref[...],
                       preferred_element_type=jnp.float32)
        hf_next, out_f = gru_cell(gi_t[:, 0:3 * H], gh_f, bhn_f_ref[...],
                                  h_f[...], m_t)
        h_f[...] = hf_next
        of_scr[t] = out_f

        gh_b = jnp.dot(h_b[...], whhT_b_ref[...],
                       preferred_element_type=jnp.float32)
        hb_next, out_b = gru_cell(gi_rt[:, 3 * H:6 * H], gh_b, bhn_b_ref[...],
                                  h_b[...], m_rt)
        h_b[...] = hb_next
        ob_scr[rt] = out_b

    # ------- attention scores + weighted pooling over VMEM-resident outputs --
    @pl.loop(0, T)
    def _(t):
        of = of_scr[t]            # (B, H) forward half of outputs[:, t, :]
        ob = ob_scr[t]            # (B, H) backward half
        a = jnp.tanh(
            jnp.dot(of, wattT_f_ref[...], preferred_element_type=jnp.float32)
            + jnp.dot(ob, wattT_b_ref[...], preferred_element_type=jnp.float32)
            + b_att_ref[...])                                   # (B, A)
        s = jnp.sum(a * usw_ref[...], axis=1, keepdims=True) + usb_ref[...]
        # Reference fills padded scores with -1e10 and (buggily) discards the
        # softmax; since padded outputs are exactly 0, multiplying by 0 here is
        # bit-identical and numerically safe.
        s = s * mask_ref[t]                                     # (B, 1)
        acc_f[...] = acc_f[...] + s * of
        acc_b[...] = acc_b[...] + s * ob

    out_ref[...] = jnp.concatenate([acc_f[...], acc_b[...]], axis=-1)


def bigru_attention(gi, mask, whhT_f, whhT_b, bhn_f, bhn_b,
                    wattT_f, wattT_b, b_att, us_w, us_b):
    """gi: (T, B, 6H) precomputed input gates (both directions); mask: (T, B, 1)."""
    T, B, H6 = gi.shape
    H = H6 // 6

    def full(shape):
        return pl.BlockSpec(shape, lambda i, _n=len(shape): (0,) * _n)

    return pl.pallas_call(
        _bigru_attn_kernel,
        out_shape=jax.ShapeDtypeStruct((B, 2 * H), jnp.float32),
        grid_spec=pltpu.PrefetchScalarGridSpec(
            num_scalar_prefetch=0,
            grid=(1,),
            in_specs=[
                full(gi.shape), full(mask.shape),
                full(whhT_f.shape), full(whhT_b.shape),
                full(bhn_f.shape), full(bhn_b.shape),
                full(wattT_f.shape), full(wattT_b.shape),
                full(b_att.shape), full(us_w.shape), full(us_b.shape),
            ],
            out_specs=full((B, 2 * H)),
            scratch_shapes=[
                pltpu.VMEM((B, H), jnp.float32),      # h_f
                pltpu.VMEM((B, H), jnp.float32),      # h_b
                pltpu.VMEM((T, B, H), jnp.float32),   # forward outputs
                pltpu.VMEM((T, B, H), jnp.float32),   # backward outputs
                pltpu.VMEM((B, H), jnp.float32),      # pooled accumulator (fwd)
                pltpu.VMEM((B, H), jnp.float32),      # pooled accumulator (bwd)
            ],
        ),
        compiler_params=pltpu.CompilerParams(
            dimension_semantics=("arbitrary",)),      # sequential recurrence
    )(gi, mask, whhT_f, whhT_b, bhn_f, bhn_b, wattT_f, wattT_b,
      b_att, us_w, us_b)


# ---------------------------------------------------------------------------
# Full forward
# ---------------------------------------------------------------------------
def sentence_attention_forward(sents, sent_len, params):
    """sents: (T, B, E) float32, sent_len: (B,) int32. Returns (B, 2H)."""
    T, B, E = sents.shape
    H = params["w_hh_f"].shape[1]
    A = params["w_att"].shape[0]
    f32 = jnp.float32

    # length mask, time-major (T, B, 1)
    mask = (jnp.arange(T, dtype=jnp.int32)[:, None]
            < sent_len[None, :]).astype(f32)[:, :, None]

    # Fold b_hh[:2H] into the input-projection bias (r/z gates always see the
    # sum); only b_hn stays per-step (inside the r-gate product).
    def gi_bias(b_ih, b_hh):
        return b_ih + jnp.concatenate([b_hh[:2 * H], jnp.zeros((H,), f32)])

    w_ih_catT = jnp.concatenate(
        [params["w_ih_f"], params["w_ih_b"]], axis=0).T          # (E, 6H)
    b_gi = jnp.concatenate(
        [gi_bias(params["b_ih_f"], params["b_hh_f"]),
         gi_bias(params["b_ih_b"], params["b_hh_b"])]).reshape(1, 6 * H)

    # Hoisted input projection for both directions: one big parallel matmul.
    gi = input_projection(sents.reshape(T * B, E), w_ih_catT,
                          b_gi).reshape(T, B, 6 * H)

    whhT_f = params["w_hh_f"].T                                  # (H, 3H)
    whhT_b = params["w_hh_b"].T
    bhn_f = params["b_hh_f"][2 * H:].reshape(1, H)
    bhn_b = params["b_hh_b"][2 * H:].reshape(1, H)
    wattT_f = params["w_att"][:, :H].T                           # (H, A)
    wattT_b = params["w_att"][:, H:].T                           # (H, A)
    b_att = params["b_att"].reshape(1, A)
    us_w = params["us_w"].reshape(1, A)
    us_b = params["us_b"].reshape(1, 1)

    return bigru_attention(gi, mask, whhT_f, whhT_b, bhn_f, bhn_b,
                           wattT_f, wattT_b, b_att, us_w, us_b)


# ---------------------------------------------------------------------------
# Pure-JAX reference (same math, original -1e10 masking) for a sanity check
# ---------------------------------------------------------------------------
def _gru_dir_ref(x, mask, w_ih, w_hh, b_ih, b_hh):
    H = w_hh.shape[1]
    B = x.shape[1]

    def step(h, inp):
        xt, mt = inp
        gi = xt @ w_ih.T + b_ih
        gh = h @ w_hh.T + b_hh
        r = jax.nn.sigmoid(gi[:, :H] + gh[:, :H])
        z = jax.nn.sigmoid(gi[:, H:2 * H] + gh[:, H:2 * H])
        n = jnp.tanh(gi[:, 2 * H:] + r * gh[:, 2 * H:])
        h_new = (1.0 - z) * n + z * h
        h_next = mt * h_new + (1.0 - mt) * h
        return h_next, mt * h_next

    h0 = jnp.zeros((B, H), jnp.float32)
    _, outs = jax.lax.scan(step, h0, (x, mask))
    return outs


def _forward_ref(sents, sent_len, params):
    T, B, E = sents.shape
    mask = (jnp.arange(T)[:, None] < sent_len[None, :]).astype(
        jnp.float32)[:, :, None]
    out_f = _gru_dir_ref(sents, mask, params["w_ih_f"], params["w_hh_f"],
                         params["b_ih_f"], params["b_hh_f"])
    out_b = _gru_dir_ref(sents[::-1], mask[::-1], params["w_ih_b"],
                         params["w_hh_b"], params["b_ih_b"],
                         params["b_hh_b"])[::-1]
    outputs = jnp.concatenate([out_f, out_b], axis=-1).transpose(1, 0, 2)
    att = jnp.tanh(outputs @ params["w_att"].T + params["b_att"])
    scores = (att @ params["us_w"].T + params["us_b"])[..., 0]    # (B, T)
    m_bt = mask[:, :, 0].T
    scores = jnp.where(m_bt == 0.0, -10000000000.0, scores)
    return jnp.sum(scores[:, :, None] * outputs, axis=1)


# ---------------------------------------------------------------------------
if __name__ == "__main__":
    # Small shapes consistent with the module (scaled-down E/H/A).
    T, B, E, H, A = 8, 2, 32, 32, 32

    key = jax.random.PRNGKey(0)
    ks = jax.random.split(key, 14)
    s = 0.1
    params = {
        "w_ih_f": jax.random.normal(ks[0], (3 * H, E), jnp.float32) * s,
        "w_hh_f": jax.random.normal(ks[1], (3 * H, H), jnp.float32) * s,
        "b_ih_f": jax.random.normal(ks[2], (3 * H,), jnp.float32) * s,
        "b_hh_f": jax.random.normal(ks[3], (3 * H,), jnp.float32) * s,
        "w_ih_b": jax.random.normal(ks[4], (3 * H, E), jnp.float32) * s,
        "w_hh_b": jax.random.normal(ks[5], (3 * H, H), jnp.float32) * s,
        "b_ih_b": jax.random.normal(ks[6], (3 * H,), jnp.float32) * s,
        "b_hh_b": jax.random.normal(ks[7], (3 * H,), jnp.float32) * s,
        "w_att": jax.random.normal(ks[8], (A, 2 * H), jnp.float32) * s,
        "b_att": jax.random.normal(ks[9], (A,), jnp.float32) * s,
        "us_w": jax.random.normal(ks[10], (1, A), jnp.float32) * s,
        "us_b": jax.random.normal(ks[11], (1,), jnp.float32) * s,
    }

    sents = jax.random.normal(ks[12], (T, B, E), jnp.float32)
    sent_len = jnp.array([T, 5], dtype=jnp.int32)  # max(sent_len) == T

    out = jax.block_until_ready(
        jax.jit(sentence_attention_forward)(sents, sent_len, params))
    ref = jax.block_until_ready(jax.jit(_forward_ref)(sents, sent_len, params))

    assert out.shape == (B, 2 * H)
    assert np.all(np.isfinite(np.asarray(out)))
    np.testing.assert_allclose(np.asarray(out), np.asarray(ref),
                               rtol=2e-2, atol=2e-2)
    print("KERNEL_OK")
</pallas_src>

<mosaic_0001>
module attributes {stable_mosaic.version = 11 : i64} {
  func.func @_input_proj_kernel(%arg0: i32, %arg1: memref<16x32xf32, #tpu.memory_space<vmem>>, %arg2: memref<32x192xf32, #tpu.memory_space<vmem>>, %arg3: memref<1x192xf32, #tpu.memory_space<vmem>>, %arg4: memref<16x192xf32, #tpu.memory_space<vmem>>) attributes {dimension_semantics = [#tpu.dimension_semantics<parallel>], iteration_bounds = array<i64: 1>, scalar_prefetch = 0 : i64, scratch_operands = 0 : i64, tpu.core_type = #tpu.core_type<tc>, window_params = [{transform_indices = @transform_0, window_bounds = array<i64: 16, 32>}, {pipeline_mode = #tpu.pipeline_mode<synchronous>, transform_indices = @transform_1, window_bounds = array<i64: 32, 192>}, {pipeline_mode = #tpu.pipeline_mode<synchronous>, transform_indices = @transform_2, window_bounds = array<i64: 1, 192>}, {transform_indices = @transform_3, window_bounds = array<i64: 16, 192>}]} {
    %c0 = arith.constant 0 : index
    %c0_0 = arith.constant 0 : index
    %0 = vector.load %arg1[%c0, %c0_0] : memref<16x32xf32, #tpu.memory_space<vmem>>, vector<16x32xf32>
    %c0_1 = arith.constant 0 : index
    %c0_2 = arith.constant 0 : index
    %1 = vector.load %arg2[%c0_1, %c0_2] : memref<32x192xf32, #tpu.memory_space<vmem>>, vector<32x192xf32>
    %cst = arith.constant dense<0.000000e+00> : vector<16x192xf32>
    %2 = tpu.matmul %0, %1, %cst {dimension_numbers = #tpu.dot_dimension_numbers<[1], [0], [0], [1], [0, 0, 1, 1], [], []>} : vector<16x32xf32>, vector<32x192xf32>, vector<16x192xf32> -> vector<16x192xf32>
    %c0_3 = arith.constant 0 : index
    %c0_4 = arith.constant 0 : index
    %3 = vector.load %arg3[%c0_3, %c0_4] : memref<1x192xf32, #tpu.memory_space<vmem>>, vector<1x192xf32>
    %4 = vector.broadcast %3 : vector<1x192xf32> to vector<16x192xf32>
    %5 = arith.addf %2, %4 : vector<16x192xf32>
    %c0_5 = arith.constant 0 : index
    %c0_6 = arith.constant 0 : index
    %6 = vector.load %arg4[%c0_5, %c0_6] : memref<16x192xf32, #tpu.memory_space<vmem>>, vector<16x192xf32>
    tpu.vector_store %arg4[%c0_5, %c0_6], %5 {strides = array<i32>} : memref<16x192xf32, #tpu.memory_space<vmem>>, vector<16x192xf32>,
    return
  }
  func.func @transform_0(%arg0: i32) -> (i32, i32) {
    %c0_i32 = arith.constant 0 : i32
    %c0_i32_0 = arith.constant 0 : i32
    return %arg0, %c0_i32 : i32, i32
  }
  func.func @transform_1(%arg0: i32) -> (i32, i32) {
    %c0_i32 = arith.constant 0 : i32
    %c0_i32_0 = arith.constant 0 : i32
    %c0_i32_1 = arith.constant 0 : i32
    return %c0_i32, %c0_i32_0 : i32, i32
  }
  func.func @transform_2(%arg0: i32) -> (i32, i32) {
    %c0_i32 = arith.constant 0 : i32
    %c0_i32_0 = arith.constant 0 : i32
    %c0_i32_1 = arith.constant 0 : i32
    return %c0_i32, %c0_i32_0 : i32, i32
  }
  func.func @transform_3(%arg0: i32) -> (i32, i32) {
    %c0_i32 = arith.constant 0 : i32
    %c0_i32_0 = arith.constant 0 : i32
    return %arg0, %c0_i32 : i32, i32
  }
}

module attributes {stable_mosaic.version = 11 : i64} {
  func.func @_bigru_attn_kernel(%arg0: i32, %arg1: memref<8x2x192xf32, #tpu.memory_space<vmem>>, %arg2: memref<8x2x1xf32, #tpu.memory_space<vmem>>, %arg3: memref<32x96xf32, #tpu.memory_space<vmem>>, %arg4: memref<32x96xf32, #tpu.memory_space<vmem>>, %arg5: memref<1x32xf32, #tpu.memory_space<vmem>>, %arg6: memref<1x32xf32, #tpu.memory_space<vmem>>, %arg7: memref<32x32xf32, #tpu.memory_space<vmem>>, %arg8: memref<32x32xf32, #tpu.memory_space<vmem>>, %arg9: memref<1x32xf32, #tpu.memory_space<vmem>>, %arg10: memref<1x32xf32, #tpu.memory_space<vmem>>, %arg11: memref<1x1xf32, #tpu.memory_space<vmem>>, %arg12: memref<2x64xf32, #tpu.memory_space<vmem>>, %arg13: memref<2x32xf32, #tpu.memory_space<vmem>>, %arg14: memref<2x32xf32, #tpu.memory_space<vmem>>, %arg15: memref<8x2x32xf32, #tpu.memory_space<vmem>>, %arg16: memref<8x2x32xf32, #tpu.memory_space<vmem>>, %arg17: memref<2x32xf32, #tpu.memory_space<vmem>>, %arg18: memref<2x32xf32, #tpu.memory_space<vmem>>) attributes {dimension_semantics = [#tpu.dimension_semantics<arbitrary>], iteration_bounds = array<i64: 1>, scalar_prefetch = 0 : i64, scratch_operands = 6 : i64, tpu.core_type = #tpu.core_type<tc>, window_params = [{pipeline_mode = #tpu.pipeline_mode<synchronous>, transform_indices = @transform_0, window_bounds = array<i64: 8, 2, 192>}, {pipeline_mode = #tpu.pipeline_mode<synchronous>, transform_indices = @transform_1, window_bounds = array<i64: 8, 2, 1>}, {pipeline_mode = #tpu.pipeline_mode<synchronous>, transform_indices = @transform_2, window_bounds = array<i64: 32, 96>}, {pipeline_mode = #tpu.pipeline_mode<synchronous>, transform_indices = @transform_3, window_bounds = array<i64: 32, 96>}, {pipeline_mode = #tpu.pipeline_mode<synchronous>, transform_indices = @transform_4, window_bounds = array<i64: 1, 32>}, {pipeline_mode = #tpu.pipeline_mode<synchronous>, transform_indices = @transform_5, window_bounds = array<i64: 1, 32>}, {pipeline_mode = #tpu.pipeline_mode<synchronous>, transform_indices = @transform_6, window_bounds = array<i64: 32, 32>}, {pipeline_mode = #tpu.pipeline_mode<synchronous>, transform_indices = @transform_7, window_bounds = array<i64: 32, 32>}, {pipeline_mode = #tpu.pipeline_mode<synchronous>, transform_indices = @transform_8, window_bounds = array<i64: 1, 32>}, {pipeline_mode = #tpu.pipeline_mode<synchronous>, transform_indices = @transform_9, window_bounds = array<i64: 1, 32>}, {pipeline_mode = #tpu.pipeline_mode<synchronous>, transform_indices = @transform_10, window_bounds = array<i64: 1, 1>}, {pipeline_mode = #tpu.pipeline_mode<synchronous>, transform_indices = @transform_11, window_bounds = array<i64: 2, 64>}]} {
    %cst = arith.constant 0.000000e+00 : f32
    %0 = vector.broadcast %cst : f32 to vector<2x32xf32>
    %c0 = arith.constant 0 : index
    %c0_0 = arith.constant 0 : index
    %1 = vector.load %arg13[%c0, %c0_0] : memref<2x32xf32, #tpu.memory_space<vmem>>, vector<2x32xf32>
    tpu.vector_store %arg13[%c0, %c0_0], %0 {strides = array<i32>} : memref<2x32xf32, #tpu.memory_space<vmem>>, vector<2x32xf32>,
    %cst_1 = arith.constant 0.000000e+00 : f32
    %2 = vector.broadcast %cst_1 : f32 to vector<2x32xf32>
    %c0_2 = arith.constant 0 : index
    %c0_3 = arith.constant 0 : index
    %3 = vector.load %arg14[%c0_2, %c0_3] : memref<2x32xf32, #tpu.memory_space<vmem>>, vector<2x32xf32>
    tpu.vector_store %arg14[%c0_2, %c0_3], %2 {strides = array<i32>} : memref<2x32xf32, #tpu.memory_space<vmem>>, vector<2x32xf32>,
    %cst_4 = arith.constant 0.000000e+00 : f32
    %4 = vector.broadcast %cst_4 : f32 to vector<2x32xf32>
    %c0_5 = arith.constant 0 : index
    %c0_6 = arith.constant 0 : index
    %5 = vector.load %arg17[%c0_5, %c0_6] : memref<2x32xf32, #tpu.memory_space<vmem>>, vector<2x32xf32>
    tpu.vector_store %arg17[%c0_5, %c0_6], %4 {strides = array<i32>} : memref<2x32xf32, #tpu.memory_space<vmem>>, vector<2x32xf32>,
    %cst_7 = arith.constant 0.000000e+00 : f32
    %6 = vector.broadcast %cst_7 : f32 to vector<2x32xf32>
    %c0_8 = arith.constant 0 : index
    %c0_9 = arith.constant 0 : index
    %7 = vector.load %arg18[%c0_8, %c0_9] : memref<2x32xf32, #tpu.memory_space<vmem>>, vector<2x32xf32>
    tpu.vector_store %arg18[%c0_8, %c0_9], %6 {strides = array<i32>} : memref<2x32xf32, #tpu.memory_space<vmem>>, vector<2x32xf32>,
    %c0_i32 = arith.constant 0 : i32
    %c8_i32 = arith.constant 8 : i32
    %8 = arith.addi %c0_i32, %c8_i32 : i32
    %c1_i32 = arith.constant 1 : i32
    scf.for %arg19 = %c0_i32 to %8 step %c1_i32  : i32 {
      %c1_i32_21 = arith.constant 1 : i32
      %14 = arith.muli %arg19, %c1_i32_21 : i32
      %c0_i32_22 = arith.constant 0 : i32
      %15 = arith.addi %c0_i32_22, %14 : i32
      %c7_i32 = arith.constant 7 : i32
      %16 = arith.subi %c7_i32, %15 : i32
      %17 = arith.index_cast %15 : i32 to index
      %c0_23 = arith.constant 0 : index
      %c0_24 = arith.constant 0 : index
      %18 = vector.load %arg1[%17, %c0_23, %c0_24] : memref<8x2x192xf32, #tpu.memory_space<vmem>>, vector<1x2x192xf32>
      %19 = vector.shape_cast %18 : vector<1x2x192xf32> to vector<2x192xf32>
      %20 = arith.index_cast %16 : i32 to index
      %c0_25 = arith.constant 0 : index
      %c0_26 = arith.constant 0 : index
      %21 = vector.load %arg1[%20, %c0_25, %c0_26] : memref<8x2x192xf32, #tpu.memory_space<vmem>>, vector<1x2x192xf32>
      %22 = vector.shape_cast %21 : vector<1x2x192xf32> to vector<2x192xf32>
      %23 = arith.index_cast %15 : i32 to index
      %c0_27 = arith.constant 0 : index
      %c0_28 = arith.constant 0 : index
      %24 = vector.load %arg2[%23, %c0_27, %c0_28] : memref<8x2x1xf32, #tpu.memory_space<vmem>>, vector<1x2x1xf32>
      %25 = vector.shape_cast %24 : vector<1x2x1xf32> to vector<2x1xf32>
      %26 = arith.index_cast %16 : i32 to index
      %c0_29 = arith.constant 0 : index
      %c0_30 = arith.constant 0 : index
      %27 = vector.load %arg2[%26, %c0_29, %c0_30] : memref<8x2x1xf32, #tpu.memory_space<vmem>>, vector<1x2x1xf32>
      %28 = vector.shape_cast %27 : vector<1x2x1xf32> to vector<2x1xf32>
      %c0_31 = arith.constant 0 : index
      %c0_32 = arith.constant 0 : index
      %29 = vector.load %arg13[%c0_31, %c0_32] : memref<2x32xf32, #tpu.memory_space<vmem>>, vector<2x32xf32>
      %c0_33 = arith.constant 0 : index
      %c0_34 = arith.constant 0 : index
      %30 = vector.load %arg3[%c0_33, %c0_34] : memref<32x96xf32, #tpu.memory_space<vmem>>, vector<32x96xf32>
      %cst_35 = arith.constant dense<0.000000e+00> : vector<2x96xf32>
      %31 = tpu.matmul %29, %30, %cst_35 {dimension_numbers = #tpu.dot_dimension_numbers<[1], [0], [0], [1], [0, 0, 1, 1], [], []>} : vector<2x32xf32>, vector<32x96xf32>, vector<2x96xf32> -> vector<2x96xf32>
      %32 = vector.extract_strided_slice %19 {offsets = [0, 0], sizes = [2, 96], strides = [1, 1]} : vector<2x192xf32> to vector<2x96xf32>
      %c0_36 = arith.constant 0 : index
      %c0_37 = arith.constant 0 : index
      %33 = vector.load %arg5[%c0_36, %c0_37] : memref<1x32xf32, #tpu.memory_space<vmem>>, vector<1x32xf32>
      %c0_38 = arith.constant 0 : index
      %c0_39 = arith.constant 0 : index
      %34 = vector.load %arg13[%c0_38, %c0_39] : memref<2x32xf32, #tpu.memory_space<vmem>>, vector<2x32xf32>
      %35 = vector.extract_strided_slice %32 {offsets = [0, 0], sizes = [2, 32], strides = [1, 1]} : vector<2x96xf32> to vector<2x32xf32>
      %36 = vector.extract_strided_slice %31 {offsets = [0, 0], sizes = [2, 32], strides = [1, 1]} : vector<2x96xf32> to vector<2x32xf32>
      %37 = arith.addf %35, %36 : vector<2x32xf32>
      %38 = arith.negf %37 : vector<2x32xf32>
      %39 = math.exp %38 : vector<2x32xf32>
      %cst_40 = arith.constant 1.000000e+00 : f32
      %40 = vector.broadcast %cst_40 : f32 to vector<2x32xf32>
      %41 = arith.addf %40, %39 : vector<2x32xf32>
      %42 = arith.divf %40, %41 : vector<2x32xf32>
      %43 = vector.extract_strided_slice %32 {offsets = [0, 32], sizes = [2, 32], strides = [1, 1]} : vector<2x96xf32> to vector<2x32xf32>
      %44 = vector.extract_strided_slice %31 {offsets = [0, 32], sizes = [2, 32], strides = [1, 1]} : vector<2x96xf32> to vector<2x32xf32>
      %45 = arith.addf %43, %44 : vector<2x32xf32>
      %46 = arith.negf %45 : vector<2x32xf32>
      %47 = math.exp %46 : vector<2x32xf32>
      %cst_41 = arith.constant 1.000000e+00 : f32
      %48 = vector.broadcast %cst_41 : f32 to vector<2x32xf32>
      %49 = arith.addf %48, %47 : vector<2x32xf32>
      %50 = arith.divf %48, %49 : vector<2x32xf32>
      %51 = vector.extract_strided_slice %32 {offsets = [0, 64], sizes = [2, 32], strides = [1, 1]} : vector<2x96xf32> to vector<2x32xf32>
      %52 = vector.extract_strided_slice %31 {offsets = [0, 64], sizes = [2, 32], strides = [1, 1]} : vector<2x96xf32> to vector<2x32xf32>
      %53 = vector.broadcast %33 : vector<1x32xf32> to vector<2x32xf32>
      %54 = arith.addf %52, %53 : vector<2x32xf32>
      %55 = arith.mulf %42, %54 : vector<2x32xf32>
      %56 = arith.addf %51, %55 : vector<2x32xf32>
      %57 = math.tanh %56 : vector<2x32xf32>
      %cst_42 = arith.constant 1.000000e+00 : f32
      %58 = vector.broadcast %cst_42 : f32 to vector<2x32xf32>
      %59 = arith.subf %58, %50 : vector<2x32xf32>
      %60 = arith.mulf %59, %57 : vector<2x32xf32>
      %61 = arith.mulf %50, %34 : vector<2x32xf32>
      %62 = arith.addf %60, %61 : vector<2x32xf32>
      %63 = vector.broadcast %25 : vector<2x1xf32> to vector<2x32xf32>
      %64 = arith.mulf %63, %62 : vector<2x32xf32>
      %cst_43 = arith.constant 1.000000e+00 : f32
      %65 = vector.broadcast %cst_43 : f32 to vector<2x1xf32>
      %66 = arith.subf %65, %25 : vector<2x1xf32>
      %67 = vector.broadcast %66 : vector<2x1xf32> to vector<2x32xf32>
      %68 = arith.mulf %67, %34 : vector<2x32xf32>
      %69 = arith.addf %64, %68 : vector<2x32xf32>
      %70 = vector.broadcast %25 : vector<2x1xf32> to vector<2x32xf32>
      %71 = arith.mulf %70, %69 : vector<2x32xf32>
      %c0_44 = arith.constant 0 : index
      %c0_45 = arith.constant 0 : index
      %72 = vector.load %arg13[%c0_44, %c0_45] : memref<2x32xf32, #tpu.memory_space<vmem>>, vector<2x32xf32>
      tpu.vector_store %arg13[%c0_44, %c0_45], %69 {strides = array<i32>} : memref<2x32xf32, #tpu.memory_space<vmem>>, vector<2x32xf32>,
      %73 = arith.index_cast %15 : i32 to index
      %c0_46 = arith.constant 0 : index
      %c0_47 = arith.constant 0 : index
      %74 = vector.load %arg15[%73, %c0_46, %c0_47] : memref<8x2x32xf32, #tpu.memory_space<vmem>>, vector<1x2x32xf32>
      %75 = vector.shape_cast %74 : vector<1x2x32xf32> to vector<2x32xf32>
      %76 = vector.shape_cast %71 : vector<2x32xf32> to vector<1x2x32xf32>
      tpu.vector_store %arg15[%73, %c0_46, %c0_47], %76 {strides = array<i32>} : memref<8x2x32xf32, #tpu.memory_space<vmem>>, vector<1x2x32xf32>,
      %c0_48 = arith.constant 0 : index
      %c0_49 = arith.constant 0 : index
      %77 = vector.load %arg14[%c0_48, %c0_49] : memref<2x32xf32, #tpu.memory_space<vmem>>, vector<2x32xf32>
      %c0_50 = arith.constant 0 : index
      %c0_51 = arith.constant 0 : index
      %78 = vector.load %arg4[%c0_50, %c0_51] : memref<32x96xf32, #tpu.memory_space<vmem>>, vector<32x96xf32>
      %cst_52 = arith.constant dense<0.000000e+00> : vector<2x96xf32>
      %79 = tpu.matmul %77, %78, %cst_52 {dimension_numbers = #tpu.dot_dimension_numbers<[1], [0], [0], [1], [0, 0, 1, 1], [], []>} : vector<2x32xf32>, vector<32x96xf32>, vector<2x96xf32> -> vector<2x96xf32>
      %80 = vector.extract_strided_slice %22 {offsets = [0, 96], sizes = [2, 96], strides = [1, 1]} : vector<2x192xf32> to vector<2x96xf32>
      %c0_53 = arith.constant 0 : index
      %c0_54 = arith.constant 0 : index
      %81 = vector.load %arg6[%c0_53, %c0_54] : memref<1x32xf32, #tpu.memory_space<vmem>>, vector<1x32xf32>
      %c0_55 = arith.constant 0 : index
      %c0_56 = arith.constant 0 : index
      %82 = vector.load %arg14[%c0_55, %c0_56] : memref<2x32xf32, #tpu.memory_space<vmem>>, vector<2x32xf32>
      %83 = vector.extract_strided_slice %80 {offsets = [0, 0], sizes = [2, 32], strides = [1, 1]} : vector<2x96xf32> to vector<2x32xf32>
      %84 = vector.extract_strided_slice %79 {offsets = [0, 0], sizes = [2, 32], strides = [1, 1]} : vector<2x96xf32> to vector<2x32xf32>
      %85 = arith.addf %83, %84 : vector<2x32xf32>
      %86 = arith.negf %85 : vector<2x32xf32>
      %87 = math.exp %86 : vector<2x32xf32>
      %cst_57 = arith.constant 1.000000e+00 : f32
      %88 = vector.broadcast %cst_57 : f32 to vector<2x32xf32>
      %89 = arith.addf %88, %87 : vector<2x32xf32>
      %90 = arith.divf %88, %89 : vector<2x32xf32>
      %91 = vector.extract_strided_slice %80 {offsets = [0, 32], sizes = [2, 32], strides = [1, 1]} : vector<2x96xf32> to vector<2x32xf32>
      %92 = vector.extract_strided_slice %79 {offsets = [0, 32], sizes = [2, 32], strides = [1, 1]} : vector<2x96xf32> to vector<2x32xf32>
      %93 = arith.addf %91, %92 : vector<2x32xf32>
      %94 = arith.negf %93 : vector<2x32xf32>
      %95 = math.exp %94 : vector<2x32xf32>
      %cst_58 = arith.constant 1.000000e+00 : f32
      %96 = vector.broadcast %cst_58 : f32 to vector<2x32xf32>
      %97 = arith.addf %96, %95 : vector<2x32xf32>
      %98 = arith.divf %96, %97 : vector<2x32xf32>
      %99 = vector.extract_strided_slice %80 {offsets = [0, 64], sizes = [2, 32], strides = [1, 1]} : vector<2x96xf32> to vector<2x32xf32>
      %100 = vector.extract_strided_slice %79 {offsets = [0, 64], sizes = [2, 32], strides = [1, 1]} : vector<2x96xf32> to vector<2x32xf32>
      %101 = vector.broadcast %81 : vector<1x32xf32> to vector<2x32xf32>
      %102 = arith.addf %100, %101 : vector<2x32xf32>
      %103 = arith.mulf %90, %102 : vector<2x32xf32>
      %104 = arith.addf %99, %103 : vector<2x32xf32>
      %105 = math.tanh %104 : vector<2x32xf32>
      %cst_59 = arith.constant 1.000000e+00 : f32
      %106 = vector.broadcast %cst_59 : f32 to vector<2x32xf32>
      %107 = arith.subf %106, %98 : vector<2x32xf32>
      %108 = arith.mulf %107, %105 : vector<2x32xf32>
      %109 = arith.mulf %98, %82 : vector<2x32xf32>
      %110 = arith.addf %108, %109 : vector<2x32xf32>
      %111 = vector.broadcast %28 : vector<2x1xf32> to vector<2x32xf32>
      %112 = arith.mulf %111, %110 : vector<2x32xf32>
      %cst_60 = arith.constant 1.000000e+00 : f32
      %113 = vector.broadcast %cst_60 : f32 to vector<2x1xf32>
      %114 = arith.subf %113, %28 : vector<2x1xf32>
      %115 = vector.broadcast %114 : vector<2x1xf32> to vector<2x32xf32>
      %116 = arith.mulf %115, %82 : vector<2x32xf32>
      %117 = arith.addf %112, %116 : vector<2x32xf32>
      %118 = vector.broadcast %28 : vector<2x1xf32> to vector<2x32xf32>
      %119 = arith.mulf %118, %117 : vector<2x32xf32>
      %c0_61 = arith.constant 0 : index
      %c0_62 = arith.constant 0 : index
      %120 = vector.load %arg14[%c0_61, %c0_62] : memref<2x32xf32, #tpu.memory_space<vmem>>, vector<2x32xf32>
      tpu.vector_store %arg14[%c0_61, %c0_62], %117 {strides = array<i32>} : memref<2x32xf32, #tpu.memory_space<vmem>>, vector<2x32xf32>,
      %121 = arith.index_cast %16 : i32 to index
      %c0_63 = arith.constant 0 : index
      %c0_64 = arith.constant 0 : index
      %122 = vector.load %arg16[%121, %c0_63, %c0_64] : memref<8x2x32xf32, #tpu.memory_space<vmem>>, vector<1x2x32xf32>
      %123 = vector.shape_cast %122 : vector<1x2x32xf32> to vector<2x32xf32>
      %124 = vector.shape_cast %119 : vector<2x32xf32> to vector<1x2x32xf32>
      tpu.vector_store %arg16[%121, %c0_63, %c0_64], %124 {strides = array<i32>} : memref<8x2x32xf32, #tpu.memory_space<vmem>>, vector<1x2x32xf32>,
    }
    %c8_i32_10 = arith.constant 8 : i32
    %c0_i32_11 = arith.constant 0 : i32
    %c8_i32_12 = arith.constant 8 : i32
    %9 = arith.addi %c0_i32_11, %c8_i32_12 : i32
    %c1_i32_13 = arith.constant 1 : i32
    scf.for %arg19 = %c0_i32_11 to %9 step %c1_i32_13  : i32 {
      %c1_i32_21 = arith.constant 1 : i32
      %14 = arith.muli %arg19, %c1_i32_21 : i32
      %c0_i32_22 = arith.constant 0 : i32
      %15 = arith.addi %c0_i32_22, %14 : i32
      %16 = arith.index_cast %15 : i32 to index
      %c0_23 = arith.constant 0 : index
      %c0_24 = arith.constant 0 : index
      %17 = vector.load %arg15[%16, %c0_23, %c0_24] : memref<8x2x32xf32, #tpu.memory_space<vmem>>, vector<1x2x32xf32>
      %18 = vector.shape_cast %17 : vector<1x2x32xf32> to vector<2x32xf32>
      %19 = arith.index_cast %15 : i32 to index
      %c0_25 = arith.constant 0 : index
      %c0_26 = arith.constant 0 : index
      %20 = vector.load %arg16[%19, %c0_25, %c0_26] : memref<8x2x32xf32, #tpu.memory_space<vmem>>, vector<1x2x32xf32>
      %21 = vector.shape_cast %20 : vector<1x2x32xf32> to vector<2x32xf32>
      %c0_27 = arith.constant 0 : index
      %c0_28 = arith.constant 0 : index
      %22 = vector.load %arg7[%c0_27, %c0_28] : memref<32x32xf32, #tpu.memory_space<vmem>>, vector<32x32xf32>
      %cst_29 = arith.constant dense<0.000000e+00> : vector<2x32xf32>
      %23 = tpu.matmul %18, %22, %cst_29 {dimension_numbers = #tpu.dot_dimension_numbers<[1], [0], [0], [1], [0, 0, 1, 1], [], []>} : vector<2x32xf32>, vector<32x32xf32>, vector<2x32xf32> -> vector<2x32xf32>
      %c0_30 = arith.constant 0 : index
      %c0_31 = arith.constant 0 : index
      %24 = vector.load %arg8[%c0_30, %c0_31] : memref<32x32xf32, #tpu.memory_space<vmem>>, vector<32x32xf32>
      %cst_32 = arith.constant dense<0.000000e+00> : vector<2x32xf32>
      %25 = tpu.matmul %21, %24, %cst_32 {dimension_numbers = #tpu.dot_dimension_numbers<[1], [0], [0], [1], [0, 0, 1, 1], [], []>} : vector<2x32xf32>, vector<32x32xf32>, vector<2x32xf32> -> vector<2x32xf32>
      %26 = arith.addf %23, %25 : vector<2x32xf32>
      %c0_33 = arith.constant 0 : index
      %c0_34 = arith.constant 0 : index
      %27 = vector.load %arg9[%c0_33, %c0_34] : memref<1x32xf32, #tpu.memory_space<vmem>>, vector<1x32xf32>
      %28 = vector.broadcast %27 : vector<1x32xf32> to vector<2x32xf32>
      %29 = arith.addf %26, %28 : vector<2x32xf32>
      %30 = math.tanh %29 : vector<2x32xf32>
      %c0_35 = arith.constant 0 : index
      %c0_36 = arith.constant 0 : index
      %31 = vector.load %arg10[%c0_35, %c0_36] : memref<1x32xf32, #tpu.memory_space<vmem>>, vector<1x32xf32>
      %32 = vector.broadcast %31 : vector<1x32xf32> to vector<2x32xf32>
      %33 = arith.mulf %30, %32 : vector<2x32xf32>
      %cst_37 = arith.constant dense<0.000000e+00> : vector<2xf32>
      %34 = vector.multi_reduction <add>, %33, %cst_37 [1] : vector<2x32xf32> to vector<2xf32>
      %35 = vector.shape_cast %34 : vector<2xf32> to vector<2x1xf32>
      %c0_38 = arith.constant 0 : index
      %c0_39 = arith.constant 0 : index
      %36 = vector.load %arg11[%c0_38, %c0_39] : memref<1x1xf32, #tpu.memory_space<vmem>>, vector<1x1xf32>
      %37 = vector.broadcast %36 : vector<1x1xf32> to vector<2x1xf32>
      %38 = arith.addf %35, %37 : vector<2x1xf32>
      %39 = arith.index_cast %15 : i32 to index
      %c0_40 = arith.constant 0 : index
      %c0_41 = arith.constant 0 : index
      %40 = vector.load %arg2[%39, %c0_40, %c0_41] : memref<8x2x1xf32, #tpu.memory_space<vmem>>, vector<1x2x1xf32>
      %41 = vector.shape_cast %40 : vector<1x2x1xf32> to vector<2x1xf32>
      %42 = arith.mulf %38, %41 : vector<2x1xf32>
      %c0_42 = arith.constant 0 : index
      %c0_43 = arith.constant 0 : index
      %43 = vector.load %arg17[%c0_42, %c0_43] : memref<2x32xf32, #tpu.memory_space<vmem>>, vector<2x32xf32>
      %44 = vector.broadcast %42 : vector<2x1xf32> to vector<2x32xf32>
      %45 = arith.mulf %44, %18 : vector<2x32xf32>
      %46 = arith.addf %43, %45 : vector<2x32xf32>
      %c0_44 = arith.constant 0 : index
      %c0_45 = arith.constant 0 : index
      %47 = vector.load %arg17[%c0_44, %c0_45] : memref<2x32xf32, #tpu.memory_space<vmem>>, vector<2x32xf32>
      tpu.vector_store %arg17[%c0_44, %c0_45], %46 {strides = array<i32>} : memref<2x32xf32, #tpu.memory_space<vmem>>, vector<2x32xf32>,
      %c0_46 = arith.constant 0 : index
      %c0_47 = arith.constant 0 : index
      %48 = vector.load %arg18[%c0_46, %c0_47] : memref<2x32xf32, #tpu.memory_space<vmem>>, vector<2x32xf32>
      %49 = vector.broadcast %42 : vector<2x1xf32> to vector<2x32xf32>
      %50 = arith.mulf %49, %21 : vector<2x32xf32>
      %51 = arith.addf %48, %50 : vector<2x32xf32>
      %c0_48 = arith.constant 0 : index
      %c0_49 = arith.constant 0 : index
      %52 = vector.load %arg18[%c0_48, %c0_49] : memref<2x32xf32, #tpu.memory_space<vmem>>, vector<2x32xf32>
      tpu.vector_store %arg18[%c0_48, %c0_49], %51 {strides = array<i32>} : memref<2x32xf32, #tpu.memory_space<vmem>>, vector<2x32xf32>,
    }
    %c8_i32_14 = arith.constant 8 : i32
    %c0_15 = arith.constant 0 : index
    %c0_16 = arith.constant 0 : index
    %10 = vector.load %arg17[%c0_15, %c0_16] : memref<2x32xf32, #tpu.memory_space<vmem>>, vector<2x32xf32>
    %c0_17 = arith.constant 0 : index
    %c0_18 = arith.constant 0 : index
    %11 = vector.load %arg18[%c0_17, %c0_18] : memref<2x32xf32, #tpu.memory_space<vmem>>, vector<2x32xf32>
    %12 = tpu.concatenate %10, %11 in 1 : vector<2x32xf32>, vector<2x32xf32> -> vector<2x64xf32>
    %c0_19 = arith.constant 0 : index
    %c0_20 = arith.constant 0 : index
    %13 = vector.load %arg12[%c0_19, %c0_20] : memref<2x64xf32, #tpu.memory_space<vmem>>, vector<2x64xf32>
    tpu.vector_store %arg12[%c0_19, %c0_20], %12 {strides = array<i32>} : memref<2x64xf32, #tpu.memory_space<vmem>>, vector<2x64xf32>,
    return
  }
  func.func @transform_0(%arg0: i32) -> (i32, i32, i32) {
    %c0_i32 = arith.constant 0 : i32
    %c0_i32_0 = arith.constant 0 : i32
    %c0_i32_1 = arith.constant 0 : i32
    %c0_i32_2 = arith.constant 0 : i32
    return %c0_i32, %c0_i32_0, %c0_i32_1 : i32, i32, i32
  }
  func.func @transform_1(%arg0: i32) -> (i32, i32, i32) {
    %c0_i32 = arith.constant 0 : i32
    %c0_i32_0 = arith.constant 0 : i32
    %c0_i32_1 = arith.constant 0 : i32
    %c0_i32_2 = arith.constant 0 : i32
    return %c0_i32, %c0_i32_0, %c0_i32_1 : i32, i32, i32
  }
  func.func @transform_2(%arg0: i32) -> (i32, i32) {
    %c0_i32 = arith.constant 0 : i32
    %c0_i32_0 = arith.constant 0 : i32
    %c0_i32_1 = arith.constant 0 : i32
    return %c0_i32, %c0_i32_0 : i32, i32
  }
  func.func @transform_3(%arg0: i32) -> (i32, i32) {
    %c0_i32 = arith.constant 0 : i32
    %c0_i32_0 = arith.constant 0 : i32
    %c0_i32_1 = arith.constant 0 : i32
    return %c0_i32, %c0_i32_0 : i32, i32
  }
  func.func @transform_4(%arg0: i32) -> (i32, i32) {
    %c0_i32 = arith.constant 0 : i32
    %c0_i32_0 = arith.constant 0 : i32
    %c0_i32_1 = arith.constant 0 : i32
    return %c0_i32, %c0_i32_0 : i32, i32
  }
  func.func @transform_5(%arg0: i32) -> (i32, i32) {
    %c0_i32 = arith.constant 0 : i32
    %c0_i32_0 = arith.constant 0 : i32
    %c0_i32_1 = arith.constant 0 : i32
    return %c0_i32, %c0_i32_0 : i32, i32
  }
  func.func @transform_6(%arg0: i32) -> (i32, i32) {
    %c0_i32 = arith.constant 0 : i32
    %c0_i32_0 = arith.constant 0 : i32
    %c0_i32_1 = arith.constant 0 : i32
    return %c0_i32, %c0_i32_0 : i32, i32
  }
  func.func @transform_7(%arg0: i32) -> (i32, i32) {
    %c0_i32 = arith.constant 0 : i32
    %c0_i32_0 = arith.constant 0 : i32
    %c0_i32_1 = arith.constant 0 : i32
    return %c0_i32, %c0_i32_0 : i32, i32
  }
  func.func @transform_8(%arg0: i32) -> (i32, i32) {
    %c0_i32 = arith.constant 0 : i32
    %c0_i32_0 = arith.constant 0 : i32
    %c0_i32_1 = arith.constant 0 : i32
    return %c0_i32, %c0_i32_0 : i32, i32
  }
  func.func @transform_9(%arg0: i32) -> (i32, i32) {
    %c0_i32 = arith.constant 0 : i32
    %c0_i32_0 = arith.constant 0 : i32
    %c0_i32_1 = arith.constant 0 : i32
    return %c0_i32, %c0_i32_0 : i32, i32
  }
  func.func @transform_10(%arg0: i32) -> (i32, i32) {
    %c0_i32 = arith.constant 0 : i32
    %c0_i32_0 = arith.constant 0 : i32
    %c0_i32_1 = arith.constant 0 : i32
    return %c0_i32, %c0_i32_0 : i32, i32
  }
  func.func @transform_11(%arg0: i32) -> (i32, i32) {
    %c0_i32 = arith.constant 0 : i32
    %c0_i32_0 = arith.constant 0 : i32
    %c0_i32_1 = arith.constant 0 : i32
    return %c0_i32, %c0_i32_0 : i32, i32
  }
}

</mosaic_0001>

<llo_original>
// kernel: sentence_attention_forward.2
$region0: #{sentence_attention_forward.2}
  #allocation0 [shape = 'u32[]', space=smem, size = 0x4, offset = 0x4, fixed_abs, tag = 'smem constant byte address 0x4 - core index']
  #allocation1 [shape = 'u32[144,128]{1,0:T(1,128)}', space=vmem, size = 0x12000, scoped, tag = 'internal scratch']
  %s0 = inlined_call_operand.vmem [shape: f32[16,32], index: 0, kind: input, shape index: {}]
  %s1 = inlined_call_operand.vmem [shape: f32[32,192], index: 1, kind: input, shape index: {}]
  %s2 = inlined_call_operand.vmem [shape: f32[1,192], index: 2, kind: input, shape index: {}]
  %s3 = inlined_call_operand.vmem [shape: f32[16,192], index: 3, kind: output, shape index: {}]
  %s4 = sld [smem:[#allocation0]]
  $region22: #{sentence_attention_forward.2} parent=0
    _
  %s6 = ssub.s32 1, %s4
  %s7 = scalar_select 0, %s6, %s4
  // Predicated region
  $region2: #{sentence_attention_forward.2} parent=0 // pred_check
    _
  $region3: #{sentence_attention_forward.2} parent=0 // pred_check_branch
    %9 = sbr.rel (0) target = $region5
  $region4: #{sentence_attention_forward.2} parent=0 // pred_region
    _
  $region5: #{sentence_attention_forward.2} parent=0 // pred_fallthru
    _
  // Predicated region
  $region6: #{sentence_attention_forward.2} parent=0 // pred_check
    _
  $region7: #{sentence_attention_forward.2} parent=0 // pred_check_branch
    %11 = sbr.rel (0) target = $region9
  $region8: #{sentence_attention_forward.2} parent=0 // pred_region
    _
  $region9: #{sentence_attention_forward.2} parent=0 // pred_fallthru
    _
  // Predicated region
  $region10: #{sentence_attention_forward.2} parent=0 // pred_check
    _
  $region11: #{sentence_attention_forward.2} parent=0 // pred_check_branch
    %13 = sbr.rel (0) target = $region13
  $region12: #{sentence_attention_forward.2} parent=0 // pred_region
    _
  $region13: #{sentence_attention_forward.2} parent=0 // pred_fallthru
    _
  %v14 = vld [vmem:[%s0] sm:$0xff]
  %v15 = vld [vmem:[%s0 + $0x8] sm:$0xff]
  %v16 = vld [vmem:[%s1] sm:$0xff]
  %v17 = vld [vmem:[%s1 + $0x8] sm:$0xff]
  %v18 = vld [vmem:[%s1 + $0x10] sm:$0xff]
  %v19 = vld [vmem:[%s1 + $0x18] sm:$0xff]
  %v20 = vld [vmem:[%s1 + $0x20] sm:$0xff]
  %v21 = vld [vmem:[%s1 + $0x28] sm:$0xff]
  %v22 = vld [vmem:[%s1 + $0x30] sm:$0xff]
  %v23 = vld [vmem:[%s1 + $0x38] sm:$0xff]
  %v24 = vld [vmem:[%s2] sm:$0x3]
  %v26 = vlaneseq
  %v27 = vshrl.u32 %v26, 7
  %v28 = vsub.s32 0, %v27
  %v29 = vrot.slane %v24, %v28
  %v30 = vlaneseq
  %v31 = vshrl.u32 %v30, 7
  %v32 = vsub.s32 1, %v31
  %v33 = vrot.slane %v24, %v32
  %vm36 = vcmask 261120
  %v38 = vsel %vm36, %v14, 0
  %v41 = vsel %vm36, %v15, 0
  %43 = vmatprep.subr.mxu0 %v17
  %44 = vmatpush1.msra.mxu0 %v16
  %45 = vmatprep.subr.mxu0 %v19
  %46 = vmatpush1.msra.mxu0 %v18
  %47 = vmatprep.subr.mxu0 %v21
  %48 = vmatpush1.msra.mxu0 %v20
  %49 = vmatprep.subr.mxu0 %v23
  %50 = vmatpush1.msra.mxu0 %v22
  %51 = vmatprep.subr.mxu0 0.0
  %52 = vmatpush1.msra.mxu0 0.0
  %53 = vmatprep.subr.mxu0 0.0
  %54 = vmatpush1.msra.mxu0 0.0
  %55 = vmatprep.subr.mxu0 0.0
  %56 = vmatpush1.msra.mxu0 0.0
  %57 = vmatprep.subr.mxu0 0.0
  %58 = vmatpush1.msra.mxu0 0.0
  %59 = vmatprep.subr.mxu0 0.0
  %60 = vmatpush1.msra.mxu0 0.0
  %61 = vmatprep.subr.mxu0 0.0
  %62 = vmatpush1.msra.mxu0 0.0
  %63 = vmatprep.subr.mxu0 0.0
  %64 = vmatpush1.msra.mxu0 0.0
  %65 = vmatprep.subr.mxu0 0.0
  %66 = vmatpush1.msra.mxu0 0.0
  %67 = vmatprep.subr.mxu0 0.0
  %68 = vmatpush1.msra.mxu0 0.0
  %69 = vmatprep.subr.mxu0 0.0
  %70 = vmatpush1.msra.mxu0 0.0
  %71 = vmatprep.subr.mxu0 0.0
  %72 = vmatpush1.msra.mxu0 0.0
  %73 = vmatprep.subr.mxu0 0.0
  %74 = vmatpush1.msra.mxu0 0.0
  %75 = vmatprep.subr.mxu0 0.0
  %76 = vmatpush1.msra.mxu0 0.0
  %77 = vmatprep.subr.mxu0 0.0
  %78 = vmatpush1.msra.mxu0 0.0
  %79 = vmatprep.subr.mxu0 0.0
  %80 = vmatpush1.msra.mxu0 0.0
  %81 = vmatprep.subr.mxu0 0.0
  %82 = vmatpush1.msra.mxu0 0.0
  %83 = vmatprep.subr.mxu0 0.0
  %84 = vmatpush1.msra.mxu0 0.0
  %85 = vmatprep.subr.mxu0 0.0
  %86 = vmatpush1.msra.mxu0 0.0
  %87 = vmatprep.subr.mxu0 0.0
  %88 = vmatpush1.msra.mxu0 0.0
  %89 = vmatprep.subr.mxu0 0.0
  %90 = vmatpush1.msra.mxu0 0.0
  %91 = vmatprep.subr.mxu0 0.0
  %92 = vmatpush1.msra.mxu0 0.0
  %93 = vmatprep.subr.mxu0 0.0
  %94 = vmatpush1.msra.mxu0 0.0
  %95 = vmatprep.subr.mxu0 0.0
  %96 = vmatpush1.msra.mxu0 0.0
  %97 = vmatprep.subr.mxu0 0.0
  %98 = vmatpush1.msra.mxu0 0.0
  %99 = vmatprep.subr.mxu0 0.0
  %100 = vmatpush1.msra.mxu0 0.0
  %101 = vmatprep.subr.mxu0 0.0
  %102 = vmatpush1.msra.mxu0 0.0
  %103 = vmatprep.subr.mxu0 0.0
  %104 = vmatpush1.msra.mxu0 0.0
  %105 = vmatprep.subr.mxu0 0.0
  %106 = vmatpush1.msra.mxu0 0.0
  %107 = vmatprep.mubr.f32.mxu0 0.0
  %108 = vmatmul.mubr.f32.gmra.mrb[0].mxu0 %v38
  %v109 = vpop.f32.mrb[0].mxu0
  %v110 = vadd.f32 %v29, %v109
  %v111 = vpop.f32.mrb[0].mxu0
  %v112 = vadd.f32 %v33, %v111
  %113 = vmatprep.mubr.f32.mxu0 0.0
  %114 = vmatmul.mubr.f32.gmra.mrb[0].mxu0 %v41
  %v115 = vpop.f32.mrb[0].mxu0
  %v116 = vadd.f32 %v29, %v115
  %v117 = vpop.f32.mrb[0].mxu0
  %v118 = vadd.f32 %v33, %v117
  %119 = vdwg.mxu0
  %120 = vst [vmem:[%s3] sm:$0xff] %v110
  %vm121 = vcmask 523264
  %122 = vst.msk [vmem:[%s3 + $0x8] sm:$0xff] %vm121, %v112
  %123 = vst [vmem:[%s3 + $0x10] sm:$0xff] %v116
  %124 = vst.msk [vmem:[%s3 + $0x18] sm:$0xff] %vm121, %v118
  // Predicated region
  $region14: #{sentence_attention_forward.2} parent=0 // pred_check
    _
  $region15: #{sentence_attention_forward.2} parent=0 // pred_check_branch
    %126 = sbr.rel (0) target = $region17
  $region16: #{sentence_attention_forward.2} parent=0 // pred_region
    _
  $region17: #{sentence_attention_forward.2} parent=0 // pred_fallthru
    _
  // Predicated region
  $region18: #{sentence_attention_forward.2} parent=0 // pred_check
    _
  $region19: #{sentence_attention_forward.2} parent=0 // pred_check_branch
    %128 = sbr.rel (0) target = $region21
  $region20: #{sentence_attention_forward.2} parent=0 // pred_region
    _
  $region21: #{sentence_attention_forward.2} parent=0 // pred_fallthru
    _

// kernel: sentence_attention_forward.3
$region0: #{sentence_attention_forward.3}
  #allocation0 [shape = 'u32[]', space=smem, size = 0x4, offset = 0x4, fixed_abs, tag = 'smem constant byte address 0x4 - core index']
  #allocation1 [shape = 'u32[144,128]{1,0:T(1,128)}', space=vmem, size = 0x12000, scoped, tag = 'internal scratch']
  #allocation2 [shape = 'f32[2,32]{1,0:T(2,128)}', space=vmem, size = 0x400, scoped, tag = 'scratch operand']
  #allocation3 [shape = 'f32[2,32]{1,0:T(2,128)}', space=vmem, size = 0x400, scoped, tag = 'scratch operand']
  #allocation4 [shape = 'f32[8,2,32]{2,1,0:T(2,128)}', space=vmem, size = 0x2000, scoped, tag = 'scratch operand']
  #allocation5 [shape = 'f32[8,2,32]{2,1,0:T(2,128)}', space=vmem, size = 0x2000, scoped, tag = 'scratch operand']
  #allocation6 [shape = 'f32[2,32]{1,0:T(2,128)}', space=vmem, size = 0x400, scoped, tag = 'scratch operand']
  #allocation7 [shape = 'f32[2,32]{1,0:T(2,128)}', space=vmem, size = 0x400, scoped, tag = 'scratch operand']
  #allocation8 [shape = 'f32[1,1]{1,0:T(1,128)S(1)}', space=vmem, size = 0x200, scoped, tag = 'scoped memory for sentence_attention_forward.3']
  %s0 = inlined_call_operand.vmem [shape: f32[8,2,192], index: 0, kind: input, shape index: {}]
  %s1 = inlined_call_operand.vmem [shape: f32[8,2,1], index: 1, kind: input, shape index: {}]
  %s2 = inlined_call_operand.vmem [shape: f32[32,96], index: 2, kind: input, shape index: {}]
  %s3 = inlined_call_operand.vmem [shape: f32[32,96], index: 3, kind: input, shape index: {}]
  %s4 = inlined_call_operand.vmem [shape: f32[1,32], index: 4, kind: input, shape index: {}]
  %s5 = inlined_call_operand.vmem [shape: f32[1,32], index: 5, kind: input, shape index: {}]
  %s6 = inlined_call_operand.vmem [shape: f32[32,32], index: 6, kind: input, shape index: {}]
  %s7 = inlined_call_operand.vmem [shape: f32[32,32], index: 7, kind: input, shape index: {}]
  %s8 = inlined_call_operand.vmem [shape: f32[1,32], index: 8, kind: input, shape index: {}]
  %s9 = inlined_call_operand.vmem [shape: f32[1,32], index: 9, kind: input, shape index: {}]
  %s10 = inlined_call_operand.<no memory space> [shape: f32[1,1], index: 10, kind: input, shape index: {}]
  %s11 = inlined_call_operand.hbm [shape: f32[2,64], index: 11, kind: output, shape index: {}]
  %s12 = sld [smem:[#allocation0]]
  $region68: #{sentence_attention_forward.3} parent=0
    _
  %s14 = ssub.s32 1, %s12
  %s15 = scalar_select 0, %s14, %s12
  %v16 = vstv %s10
  %17 = vst [vmem:[#allocation8] sm:$0x1] %v16
  $region1: #{sentence_attention_forward.3} parent=0
    #allocation9 [shape = 'u8[1024]{0}', space=vmem, size = 0x400, scoped, tag = 'output window, operand 0, single buffered']
    #allocation10 [shape = 's32[1]{0}', space=sflag, size = 0x4, scoped, tag = 'scoped memory for sentence_attention_forward.3']
    %18 = vsyncpa [#allocation10], 0
    // Predicated region
    $region2: #{sentence_attention_forward.3} parent=1 // pred_check
      _
    $region3: #{sentence_attention_forward.3} parent=1 // pred_check_branch
      %20 = sbr.rel (0) target = $region5
    $region4: #{sentence_attention_forward.3} parent=1 // pred_region
      _
    $region5: #{sentence_attention_forward.3} parent=1 // pred_fallthru
      _
    // Predicated region
    $region6: #{sentence_attention_forward.3} parent=1 // pred_check
      _
    $region7: #{sentence_attention_forward.3} parent=1 // pred_check_branch
      %22 = sbr.rel (0) target = $region9
    $region8: #{sentence_attention_forward.3} parent=1 // pred_region
      _
    $region9: #{sentence_attention_forward.3} parent=1 // pred_fallthru
      _
    // Predicated region
    $region10: #{sentence_attention_forward.3} parent=1 // pred_check
      _
    $region11: #{sentence_attention_forward.3} parent=1 // pred_check_branch
      %24 = sbr.rel (0) target = $region13
    $region12: #{sentence_attention_forward.3} parent=1 // pred_region
      _
    $region13: #{sentence_attention_forward.3} parent=1 // pred_fallthru
      _
    // Predicated region
    $region14: #{sentence_attention_forward.3} parent=1 // pred_check
      _
    $region15: #{sentence_attention_forward.3} parent=1 // pred_check_branch
      %26 = sbr.rel (0) target = $region17
    $region16: #{sentence_attention_forward.3} parent=1 // pred_region
      _
    $region17: #{sentence_attention_forward.3} parent=1 // pred_fallthru
      _
    // Predicated region
    $region18: #{sentence_attention_forward.3} parent=1 // pred_check
      _
    $region19: #{sentence_attention_forward.3} parent=1 // pred_check_branch
      %28 = sbr.rel (0) target = $region21
    $region20: #{sentence_attention_forward.3} parent=1 // pred_region
      _
    $region21: #{sentence_attention_forward.3} parent=1 // pred_fallthru
      _
    // Predicated region
    $region22: #{sentence_attention_forward.3} parent=1 // pred_check
      _
    $region23: #{sentence_attention_forward.3} parent=1 // pred_check_branch
      %30 = sbr.rel (0) target = $region25
    $region24: #{sentence_attention_forward.3} parent=1 // pred_region
      _
    $region25: #{sentence_attention_forward.3} parent=1 // pred_fallthru
      _
    // Predicated region
    $region26: #{sentence_attention_forward.3} parent=1 // pred_check
      _
    $region27: #{sentence_attention_forward.3} parent=1 // pred_check_branch
      %32 = sbr.rel (0) target = $region29
    $region28: #{sentence_attention_forward.3} parent=1 // pred_region
      _
    $region29: #{sentence_attention_forward.3} parent=1 // pred_fallthru
      _
    // Predicated region
    $region30: #{sentence_attention_forward.3} parent=1 // pred_check
      _
    $region31: #{sentence_attention_forward.3} parent=1 // pred_check_branch
      %34 = sbr.rel (0) target = $region33
    $region32: #{sentence_attention_forward.3} parent=1 // pred_region
      _
    $region33: #{sentence_attention_forward.3} parent=1 // pred_fallthru
      _
    // Predicated region
    $region34: #{sentence_attention_forward.3} parent=1 // pred_check
      _
    $region35: #{sentence_attention_forward.3} parent=1 // pred_check_branch
      %36 = sbr.rel (0) target = $region37
    $region36: #{sentence_attention_forward.3} parent=1 // pred_region
      _
    $region37: #{sentence_attention_forward.3} parent=1 // pred_fallthru
      _
    // Predicated region
    $region38: #{sentence_attention_forward.3} parent=1 // pred_check
      _
    $region39: #{sentence_attention_forward.3} parent=1 // pred_check_branch
      %38 = sbr.rel (0) target = $region41
    $region40: #{sentence_attention_forward.3} parent=1 // pred_region
      _
    $region41: #{sentence_attention_forward.3} parent=1 // pred_fallthru
      _
    // Predicated region
    $region42: #{sentence_attention_forward.3} parent=1 // pred_check
      _
    $region43: #{sentence_attention_forward.3} parent=1 // pred_check_branch
      %40 = sbr.rel (0) target = $region45
    $region44: #{sentence_attention_forward.3} parent=1 // pred_region
      _
    $region45: #{sentence_attention_forward.3} parent=1 // pred_fallthru
      _
    %vm41 = vcmask 254976
    %42 = vst.msk [vmem:[#allocation2] sm:$0x3] %vm41, 0.0
    %43 = vst.msk [vmem:[#allocation3] sm:$0x3] %vm41, 0.0
    %44 = vst.msk [vmem:[#allocation6] sm:$0x3] %vm41, 0.0
    %45 = vst.msk [vmem:[#allocation7] sm:$0x3] %vm41, 0.0
    loop: start=0, step=1, limit=8
    $region46: #{sentence_attention_forward.3} parent=1 // loop_pre_header
      _
    $region47: #{sentence_attention_forward.3} parent=1 // loop_header
      %s47 = sphi 0, %s51
      %p48 = scmp.ge.s32.totalorder %s47, 8
    $region48: #{sentence_attention_forward.3} parent=1 // loop_header_branch
      %50 = sbr.rel (%p48) target = $region52
    $region49: #{sentence_attention_forward.3} parent=1 // loop_body
      %s52 = ssub.s32 7, %s47
      %s53 = smul.u32 %s47, 2
      %s54 = smul.addr %s53, 2
      %s55 = scalar_lea.vmem %s0, %s54
      %v56 = vld [vmem:[%s55] sm:$0xf]
      %s57 = smul.u32 %s52, 2
      %s58 = smul.addr %s57, 2
      %s59 = scalar_lea.vmem %s0, %s58
      %v60 = vld [vmem:[%s59] sm:$0xf]
      %s61 = scalar_lea.vmem %s1, %s53
      %v62 = vld [vmem:[%s61] sm:$0x3]
      %s63 = scalar_lea.vmem %s1, %s57
      %v64 = vld [vmem:[%s63] sm:$0x3]
      %v65 = vld [vmem:[#allocation2] sm:$0x3]
      %v66 = vld [vmem:[%s2] sm:$0xff]
      %v67 = vld [vmem:[%s2 + $0x8] sm:$0xff]
      %v68 = vld [vmem:[%s2 + $0x10] sm:$0xff]
      %v69 = vld [vmem:[%s2 + $0x18] sm:$0xff]
      %vm70 = vcmask 261120
      %v72 = vsel %vm70, %v65, 0
      %74 = vmatprep.subr.mxu0 0.0
      %75 = vmatpush1.msra.mxu0 %v66
      %76 = vmatprep.subr.mxu0 0.0
      %77 = vmatpush1.msra.mxu0 %v67
      %78 = vmatprep.subr.mxu0 0.0
      %79 = vmatpush1.msra.mxu0 %v68
      %80 = vmatprep.subr.mxu0 0.0
      %81 = vmatpush1.msra.mxu0 %v69
      %82 = vmatprep.subr.mxu0 0.0
      %83 = vmatpush1.msra.mxu0 0.0
      %84 = vmatprep.subr.mxu0 0.0
      %85 = vmatpush1.msra.mxu0 0.0
      %86 = vmatprep.subr.mxu0 0.0
      %87 = vmatpush1.msra.mxu0 0.0
      %88 = vmatprep.subr.mxu0 0.0
      %89 = vmatpush1.msra.mxu0 0.0
      %90 = vmatprep.subr.mxu0 0.0
      %91 = vmatpush1.msra.mxu0 0.0
      %92 = vmatprep.subr.mxu0 0.0
      %93 = vmatpush1.msra.mxu0 0.0
      %94 = vmatprep.subr.mxu0 0.0
      %95 = vmatpush1.msra.mxu0 0.0
      %96 = vmatprep.subr.mxu0 0.0
      %97 = vmatpush1.msra.mxu0 0.0
      %98 = vmatprep.subr.mxu0 0.0
      %99 = vmatpush1.msra.mxu0 0.0
      %100 = vmatprep.subr.mxu0 0.0
      %101 = vmatpush1.msra.mxu0 0.0
      %102 = vmatprep.subr.mxu0 0.0
      %103 = vmatpush1.msra.mxu0 0.0
      %104 = vmatprep.subr.mxu0 0.0
      %105 = vmatpush1.msra.mxu0 0.0
      %106 = vmatprep.subr.mxu0 0.0
      %107 = vmatpush1.msra.mxu0 0.0
      %108 = vmatprep.subr.mxu0 0.0
      %109 = vmatpush1.msra.mxu0 0.0
      %110 = vmatprep.subr.mxu0 0.0
      %111 = vmatpush1.msra.mxu0 0.0
      %112 = vmatprep.subr.mxu0 0.0
      %113 = vmatpush1.msra.mxu0 0.0
      %114 = vmatprep.subr.mxu0 0.0
      %115 = vmatpush1.msra.mxu0 0.0
      %116 = vmatprep.subr.mxu0 0.0
      %117 = vmatpush1.msra.mxu0 0.0
      %118 = vmatprep.subr.mxu0 0.0
      %119 = vmatpush1.msra.mxu0 0.0
      %120 = vmatprep.subr.mxu0 0.0
      %121 = vmatpush1.msra.mxu0 0.0
      %122 = vmatprep.subr.mxu0 0.0
      %123 = vmatpush1.msra.mxu0 0.0
      %124 = vmatprep.subr.mxu0 0.0
      %125 = vmatpush1.msra.mxu0 0.0
      %126 = vmatprep.subr.mxu0 0.0
      %127 = vmatpush1.msra.mxu0 0.0
      %128 = vmatprep.subr.mxu0 0.0
      %129 = vmatpush1.msra.mxu0 0.0
      %130 = vmatprep.subr.mxu0 0.0
      %131 = vmatpush1.msra.mxu0 0.0
      %132 = vmatprep.subr.mxu0 0.0
      %133 = vmatpush1.msra.mxu0 0.0
      %134 = vmatprep.subr.mxu0 0.0
      %135 = vmatpush1.msra.mxu0 0.0
      %136 = vmatprep.subr.mxu0 0.0
      %137 = vmatpush1.msra.mxu0 0.0
      %138 = vmatprep.mubr.f32.mxu0 0.0
      %139 = vmatmul.mubr.f32.gmra.mrb[0].mxu0 %v72
      %v140 = vpop.f32.mrb[0].mxu0
      %v141 = vadd.f32 0.0, %v140
      %v142 = vpop.f32.mrb[0].mxu0
      %143 = vdwg.mxu0
      %v144 = vld [vmem:[%s4] sm:$0x1]
      %v145 = vadd.f32 %v56, %v141
      %v146 = vxor.u32 %v145, 2147483648
      %v147 = vmul.f32 %v146, 1.442695
      %v148 = vpow.pop %v147
      %v149 = vadd.f32 %v148, 1.0
      %v150 = vrcp.pop %v149
      %v151 = vmul.f32 1.0, %v150
      %v153 = vlaneseq
      %v154 = vshrl.u32 %v153, 7
      %v155 = vsub.s32 0, %v154
      %v156 = vrot.slane %v144, %v155
      %157 = vrot.lane.b32.xlu0 %v156, 64
      %v158 = vpop.permute.xlu0 %157
      %v160 = vadd.f32 %v141, %v158
      %v163 = vunpack.c.l.s4 1983009808
      %v164 = vunpack.c.0.s8 %v163
      %v165 = vlaneseq
      %v166 = vshrl.u32 %v165, 7
      %v167 = vsub.s32 %v164, %v166
      %v168 = vrot.slane %v160, %v167
      %169 = vrot.lane.b32.xlu0 %v168, 64
      %v170 = vpop.permute.xlu0 %169
      %v172 = vmul.f32 %v151, %v170
      %174 = vrot.lane.b32.xlu0 %v172, 64
      %v175 = vpop.permute.xlu0 %174
      %v177 = vadd.f32 %v56, %v175
      %v178 = vtanh.pop %v177
      %v179 = vsub.f32 1.0, %v151
      %181 = vrot.lane.b32.xlu0 %v178, 96
      %v182 = vpop.permute.xlu0 %181
      %v184 = vmul.f32 %v179, %v182
      %v186 = vunpack.c.l.s4 1983009808
      %v187 = vunpack.c.0.s8 %v186
      %v188 = vlaneseq
      %v189 = vshrl.u32 %v188, 7
      %v190 = vsub.s32 %v187, %v189
      %v191 = vrot.slane %v65, %v190
      %192 = vrot.lane.b32.xlu0 %v191, 32
      %v193 = vpop.permute.xlu0 %192
      %v195 = vmul.f32 %v151, %v193
      %v196 = vadd.f32 %v184, %v195
      %198 = vset.pattern.permute.xlu0 0
      %199 = vperm.xlu0 %198, %v62
      %v200 = vpop.permute.xlu0 %199
      %v204 = vunpack.c.l.s4 1983009808
      %v205 = vunpack.c.0.s8 %v204
      %v206 = vlaneseq
      %v207 = vshrl.u32 %v206, 7
      %v208 = vsub.s32 %v205, %v207
      %v209 = vrot.slane %v196, %v208
      %210 = vrot.lane.b32.xlu0 %v209, 96
      %v211 = vpop.permute.xlu0 %210
      %v213 = vmul.f32 %v200, %v211
      %v214 = vsub.f32 1.0, %v62
      %216 = vset.pattern.permute.xlu0 0
      %217 = vperm.xlu0 %216, %v214
      %v218 = vpop.permute.xlu0 %217
      %v220 = vmul.f32 %v218, %v65
      %v221 = vadd.f32 %v213, %v220
      %v222 = vmul.f32 %v200, %v221
      %223 = vst.msk [vmem:[#allocation2] sm:$0x3] %vm41, %v221
      %s224 = scalar_lea.vmem [#allocation4], %s53
      %225 = vst.msk [vmem:[%s224] sm:$0x3] %vm41, %v222
      %v226 = vld [vmem:[#allocation3] sm:$0x3]
      %v227 = vld [vmem:[%s3] sm:$0xff]
      %v228 = vld [vmem:[%s3 + $0x8] sm:$0xff]
      %v229 = vld [vmem:[%s3 + $0x10] sm:$0xff]
      %v230 = vld [vmem:[%s3 + $0x18] sm:$0xff]
      %v232 = vsel %vm70, %v226, 0
      %234 = vmatprep.subr.mxu0 0.0
      %235 = vmatpush1.msra.mxu0 %v227
      %236 = vmatprep.subr.mxu0 0.0
      %237 = vmatpush1.msra.mxu0 %v228
      %238 = vmatprep.subr.mxu0 0.0
      %239 = vmatpush1.msra.mxu0 %v229
      %240 = vmatprep.subr.mxu0 0.0
      %241 = vmatpush1.msra.mxu0 %v230
      %242 = vmatprep.subr.mxu0 0.0
      %243 = vmatpush1.msra.mxu0 0.0
      %244 = vmatprep.subr.mxu0 0.0
      %245 = vmatpush1.msra.mxu0 0.0
      %246 = vmatprep.subr.mxu0 0.0
      %247 = vmatpush1.msra.mxu0 0.0
      %248 = vmatprep.subr.mxu0 0.0
      %249 = vmatpush1.msra.mxu0 0.0
      %250 = vmatprep.subr.mxu0 0.0
      %251 = vmatpush1.msra.mxu0 0.0
      %252 = vmatprep.subr.mxu0 0.0
      %253 = vmatpush1.msra.mxu0 0.0
      %254 = vmatprep.subr.mxu0 0.0
      %255 = vmatpush1.msra.mxu0 0.0
      %256 = vmatprep.subr.mxu0 0.0
      %257 = vmatpush1.msra.mxu0 0.0
      %258 = vmatprep.subr.mxu0 0.0
      %259 = vmatpush1.msra.mxu0 0.0
      %260 = vmatprep.subr.mxu0 0.0
      %261 = vmatpush1.msra.mxu0 0.0
      %262 = vmatprep.subr.mxu0 0.0
      %263 = vmatpush1.msra.mxu0 0.0
      %264 = vmatprep.subr.mxu0 0.0
      %265 = vmatpush1.msra.mxu0 0.0
      %266 = vmatprep.subr.mxu0 0.0
      %267 = vmatpush1.msra.mxu0 0.0
      %268 = vmatprep.subr.mxu0 0.0
      %269 = vmatpush1.msra.mxu0 0.0
      %270 = vmatprep.subr.mxu0 0.0
      %271 = vmatpush1.msra.mxu0 0.0
      %272 = vmatprep.subr.mxu0 0.0
      %273 = vmatpush1.msra.mxu0 0.0
      %274 = vmatprep.subr.mxu0 0.0
      %275 = vmatpush1.msra.mxu0 0.0
      %276 = vmatprep.subr.mxu0 0.0
      %277 = vmatpush1.msra.mxu0 0.0
      %278 = vmatprep.subr.mxu0 0.0
      %279 = vmatpush1.msra.mxu0 0.0
      %280 = vmatprep.subr.mxu0 0.0
      %281 = vmatpush1.msra.mxu0 0.0
      %282 = vmatprep.subr.mxu0 0.0
      %283 = vmatpush1.msra.mxu0 0.0
      %284 = vmatprep.subr.mxu0 0.0
      %285 = vmatpush1.msra.mxu0 0.0
      %286 = vmatprep.subr.mxu0 0.0
      %287 = vmatpush1.msra.mxu0 0.0
      %288 = vmatprep.subr.mxu0 0.0
      %289 = vmatpush1.msra.mxu0 0.0
      %290 = vmatprep.subr.mxu0 0.0
      %291 = vmatpush1.msra.mxu0 0.0
      %292 = vmatprep.subr.mxu0 0.0
      %293 = vmatpush1.msra.mxu0 0.0
      %294 = vmatprep.subr.mxu0 0.0
      %295 = vmatpush1.msra.mxu0 0.0
      %296 = vmatprep.subr.mxu0 0.0
      %297 = vmatpush1.msra.mxu0 0.0
      %298 = vmatprep.mubr.f32.mxu0 0.0
      %299 = vmatmul.mubr.f32.gmra.mrb[0].mxu0 %v232
      %v300 = vpop.f32.mrb[0].mxu0
      %v301 = vadd.f32 0.0, %v300
      %v302 = vpop.f32.mrb[0].mxu0
      %303 = vdwg.mxu0
      %v304 = vld [vmem:[%s5] sm:$0x1]
      %v307 = vunpack.c.l.s4 1983009808
      %v308 = vunpack.c.0.s8 %v307
      %v309 = vlaneseq
      %v310 = vshrl.u32 %v309, 7
      %v311 = vsub.s32 %v308, %v310
      %v312 = vrot.slane %v301, %v311
      %313 = vrot.lane.b32.xlu0 %v312, 96
      %v314 = vpop.permute.xlu0 %313
      %v316 = vadd.f32 %v60, %v314
      %v317 = vxor.u32 %v316, 2147483648
      %v318 = vmul.f32 %v317, 1.442695
      %v319 = vpow.pop %v318
      %v320 = vadd.f32 %v319, 1.0
      %v321 = vrcp.pop %v320
      %v322 = vmul.f32 1.0, %v321
      %v324 = vrot.slane %v60, 2
      %v326 = vadd.f32 %v324, %v314
      %v327 = vxor.u32 %v326, 2147483648
      %v328 = vmul.f32 %v327, 1.442695
      %v329 = vpow.pop %v328
      %v330 = vadd.f32 %v329, 1.0
      %v331 = vrcp.pop %v330
      %v332 = vmul.f32 1.0, %v331
      %v334 = vlaneseq
      %v335 = vshrl.u32 %v334, 7
      %v336 = vsub.s32 0, %v335
      %v337 = vrot.slane %v304, %v336
      %338 = vrot.lane.b32.xlu0 %v337, 64
      %v339 = vpop.permute.xlu0 %338
      %v341 = vadd.f32 %v301, %v339
      %v344 = vunpack.c.l.s4 1983009808
      %v345 = vunpack.c.0.s8 %v344
      %v346 = vlaneseq
      %v347 = vshrl.u32 %v346, 7
      %v348 = vsub.s32 %v345, %v347
      %v349 = vrot.slane %v341, %v348
      %350 = vrot.lane.b32.xlu0 %v349, 32
      %v351 = vpop.permute.xlu0 %350
      %v353 = vmul.f32 %v322, %v351
      %354 = vrot.lane.b32.xlu0 %v60, 96
      %v355 = vpop.permute.xlu0 %354
      %v356 = vrot.slane %v355, 2
      %359 = vrot.lane.b32.xlu0 %v353, 32
      %v360 = vpop.permute.xlu0 %359
      %v362 = vadd.f32 %v356, %v360
      %v363 = vtanh.pop %v362
      %v364 = vsub.f32 1.0, %v332
      %v365 = vmul.f32 %v364, %v363
      %v366 = vmul.f32 %v332, %v226
      %v367 = vadd.f32 %v365, %v366
      %369 = vset.pattern.permute.xlu0 0
      %370 = vperm.xlu0 %369, %v64
      %v371 = vpop.permute.xlu0 %370
      %v373 = vmul.f32 %v371, %v367
      %v374 = vsub.f32 1.0, %v64
      %376 = vset.pattern.permute.xlu0 0
      %377 = vperm.xlu0 %376, %v374
      %v378 = vpop.permute.xlu0 %377
      %v380 = vmul.f32 %v378, %v226
      %v381 = vadd.f32 %v373, %v380
      %v382 = vmul.f32 %v371, %v381
      %383 = vst.msk [vmem:[#allocation3] sm:$0x3] %vm41, %v381
      %s384 = scalar_lea.vmem [#allocation5], %s57
      %385 = vst.msk [vmem:[%s384] sm:$0x3] %vm41, %v382
    $region50: #{sentence_attention_forward.3} parent=1 // loop_footer
      %s51 = sadd.s32 1, %s47
    $region51: #{sentence_attention_forward.3} parent=1 // loop_footer_branch
      %46 = sbr.rel target = $region47
    $region52: #{sentence_attention_forward.3} parent=1 // loop_exit
      _
    loop: start=0, step=1, limit=8
    $region53: #{sentence_attention_forward.3} parent=1 // loop_pre_header
      _
    $region54: #{sentence_attention_forward.3} parent=1 // loop_header
      %s387 = sphi 0, %s391
      %p388 = scmp.ge.s32.totalorder %s387, 8
    $region55: #{sentence_attention_forward.3} parent=1 // loop_header_branch
      %390 = sbr.rel (%p388) target = $region59
    $region56: #{sentence_attention_forward.3} parent=1 // loop_body
      %s392 = smul.u32 %s387, 2
      %s393 = scalar_lea.vmem [#allocation4], %s392
      %v394 = vld [vmem:[%s393] sm:$0x3]
      %s395 = scalar_lea.vmem [#allocation5], %s392
      %v396 = vld [vmem:[%s395] sm:$0x3]
      %v397 = vld [vmem:[%s6] sm:$0xff]
      %v398 = vld [vmem:[%s6 + $0x8] sm:$0xff]
      %v399 = vld [vmem:[%s6 + $0x10] sm:$0xff]
      %v400 = vld [vmem:[%s6 + $0x18] sm:$0xff]
      %v401 = vld [vmem:[%s7] sm:$0xff]
      %v402 = vld [vmem:[%s7 + $0x8] sm:$0xff]
      %v403 = vld [vmem:[%s7 + $0x10] sm:$0xff]
      %v404 = vld [vmem:[%s7 + $0x18] sm:$0xff]
      %vm405 = vcmask 261120
      %v407 = vsel %vm405, %v396, 0
      %409 = vmatprep.subr.mxu0 0.0
      %410 = vmatpush1.msra.mxu0 %v401
      %411 = vmatprep.subr.mxu0 0.0
      %412 = vmatpush1.msra.mxu0 %v402
      %413 = vmatprep.subr.mxu0 0.0
      %414 = vmatpush1.msra.mxu0 %v403
      %415 = vmatprep.subr.mxu0 0.0
      %416 = vmatpush1.msra.mxu0 %v404
      %417 = vmatprep.subr.mxu0 0.0
      %418 = vmatpush1.msra.mxu0 0.0
      %419 = vmatprep.subr.mxu0 0.0
      %420 = vmatpush1.msra.mxu0 0.0
      %421 = vmatprep.subr.mxu0 0.0
      %422 = vmatpush1.msra.mxu0 0.0
      %423 = vmatprep.subr.mxu0 0.0
      %424 = vmatpush1.msra.mxu0 0.0
      %425 = vmatprep.subr.mxu0 0.0
      %426 = vmatpush1.msra.mxu0 0.0
      %427 = vmatprep.subr.mxu0 0.0
      %428 = vmatpush1.msra.mxu0 0.0
      %429 = vmatprep.subr.mxu0 0.0
      %430 = vmatpush1.msra.mxu0 0.0
      %431 = vmatprep.subr.mxu0 0.0
      %432 = vmatpush1.msra.mxu0 0.0
      %433 = vmatprep.subr.mxu0 0.0
      %434 = vmatpush1.msra.mxu0 0.0
      %435 = vmatprep.subr.mxu0 0.0
      %436 = vmatpush1.msra.mxu0 0.0
      %437 = vmatprep.subr.mxu0 0.0
      %438 = vmatpush1.msra.mxu0 0.0
      %439 = vmatprep.subr.mxu0 0.0
      %440 = vmatpush1.msra.mxu0 0.0
      %441 = vmatprep.subr.mxu0 0.0
      %442 = vmatpush1.msra.mxu0 0.0
      %443 = vmatprep.subr.mxu0 0.0
      %444 = vmatpush1.msra.mxu0 0.0
      %445 = vmatprep.subr.mxu0 0.0
      %446 = vmatpush1.msra.mxu0 0.0
      %447 = vmatprep.subr.mxu0 0.0
      %448 = vmatpush1.msra.mxu0 0.0
      %449 = vmatprep.subr.mxu0 0.0
      %450 = vmatpush1.msra.mxu0 0.0
      %451 = vmatprep.subr.mxu0 0.0
      %452 = vmatpush1.msra.mxu0 0.0
      %453 = vmatprep.subr.mxu0 0.0
      %454 = vmatpush1.msra.mxu0 0.0
      %455 = vmatprep.subr.mxu0 0.0
      %456 = vmatpush1.msra.mxu0 0.0
      %457 = vmatprep.subr.mxu0 0.0
      %458 = vmatpush1.msra.mxu0 0.0
      %459 = vmatprep.subr.mxu0 0.0
      %460 = vmatpush1.msra.mxu0 0.0
      %461 = vmatprep.subr.mxu0 0.0
      %462 = vmatpush1.msra.mxu0 0.0
      %463 = vmatprep.subr.mxu0 0.0
      %464 = vmatpush1.msra.mxu0 0.0
      %465 = vmatprep.subr.mxu0 0.0
      %466 = vmatpush1.msra.mxu0 0.0
      %467 = vmatprep.subr.mxu0 0.0
      %468 = vmatpush1.msra.mxu0 0.0
      %469 = vmatprep.subr.mxu0 0.0
      %470 = vmatpush1.msra.mxu0 0.0
      %471 = vmatprep.subr.mxu0 0.0
      %472 = vmatpush1.msra.mxu0 0.0
      %473 = vmatprep.mubr.f32.mxu0 0.0
      %474 = vmatmul.mubr.f32.gmra.mrb[0].mxu0 %v407
      %v475 = vpop.f32.mrb[0].mxu0
      %v476 = vadd.f32 0.0, %v475
      %v477 = vpop.f32.mrb[0].mxu0
      %478 = vdwg.mxu0
      %v480 = vsel %vm405, %v394, 0
      %482 = vmatprep.subr.mxu0 0.0
      %483 = vmatpush1.msra.mxu0 %v397
      %484 = vmatprep.subr.mxu0 0.0
      %485 = vmatpush1.msra.mxu0 %v398
      %486 = vmatprep.subr.mxu0 0.0
      %487 = vmatpush1.msra.mxu0 %v399
      %488 = vmatprep.subr.mxu0 0.0
      %489 = vmatpush1.msra.mxu0 %v400
      %490 = vmatprep.subr.mxu0 0.0
      %491 = vmatpush1.msra.mxu0 0.0
      %492 = vmatprep.subr.mxu0 0.0
      %493 = vmatpush1.msra.mxu0 0.0
      %494 = vmatprep.subr.mxu0 0.0
      %495 = vmatpush1.msra.mxu0 0.0
      %496 = vmatprep.subr.mxu0 0.0
      %497 = vmatpush1.msra.mxu0 0.0
      %498 = vmatprep.subr.mxu0 0.0
      %499 = vmatpush1.msra.mxu0 0.0
      %500 = vmatprep.subr.mxu0 0.0
      %501 = vmatpush1.msra.mxu0 0.0
      %502 = vmatprep.subr.mxu0 0.0
      %503 = vmatpush1.msra.mxu0 0.0
      %504 = vmatprep.subr.mxu0 0.0
      %505 = vmatpush1.msra.mxu0 0.0
      %506 = vmatprep.subr.mxu0 0.0
      %507 = vmatpush1.msra.mxu0 0.0
      %508 = vmatprep.subr.mxu0 0.0
      %509 = vmatpush1.msra.mxu0 0.0
      %510 = vmatprep.subr.mxu0 0.0
      %511 = vmatpush1.msra.mxu0 0.0
      %512 = vmatprep.subr.mxu0 0.0
      %513 = vmatpush1.msra.mxu0 0.0
      %514 = vmatprep.subr.mxu0 0.0
      %515 = vmatpush1.msra.mxu0 0.0
      %516 = vmatprep.subr.mxu0 0.0
      %517 = vmatpush1.msra.mxu0 0.0
      %518 = vmatprep.subr.mxu0 0.0
      %519 = vmatpush1.msra.mxu0 0.0
      %520 = vmatprep.subr.mxu0 0.0
      %521 = vmatpush1.msra.mxu0 0.0
      %522 = vmatprep.subr.mxu0 0.0
      %523 = vmatpush1.msra.mxu0 0.0
      %524 = vmatprep.subr.mxu0 0.0
      %525 = vmatpush1.msra.mxu0 0.0
      %526 = vmatprep.subr.mxu0 0.0
      %527 = vmatpush1.msra.mxu0 0.0
      %528 = vmatprep.subr.mxu0 0.0
      %529 = vmatpush1.msra.mxu0 0.0
      %530 = vmatprep.subr.mxu0 0.0
      %531 = vmatpush1.msra.mxu0 0.0
      %532 = vmatprep.subr.mxu0 0.0
      %533 = vmatpush1.msra.mxu0 0.0
      %534 = vmatprep.subr.mxu0 0.0
      %535 = vmatpush1.msra.mxu0 0.0
      %536 = vmatprep.subr.mxu0 0.0
      %537 = vmatpush1.msra.mxu0 0.0
      %538 = vmatprep.subr.mxu0 0.0
      %539 = vmatpush1.msra.mxu0 0.0
      %540 = vmatprep.subr.mxu0 0.0
      %541 = vmatpush1.msra.mxu0 0.0
      %542 = vmatprep.subr.mxu0 0.0
      %543 = vmatpush1.msra.mxu0 0.0
      %544 = vmatprep.subr.mxu0 0.0
      %545 = vmatpush1.msra.mxu0 0.0
      %546 = vmatprep.mubr.f32.mxu0 0.0
      %547 = vmatmul.mubr.f32.gmra.mrb[0].mxu0 %v480
      %v548 = vpop.f32.mrb[0].mxu0
      %v549 = vadd.f32 %v476, %v548
      %v550 = vpop.f32.mrb[0].mxu0
      %551 = vdwg.mxu0
      %v552 = vld [vmem:[%s8] sm:$0x1]
      %v554 = vlaneseq
      %v555 = vshrl.u32 %v554, 7
      %v556 = vsub.s32 0, %v555
      %v557 = vrot.slane %v552, %v556
      %v559 = vadd.f32 %v549, %v557
      %v560 = vtanh.pop %v559
      %v561 = vld [vmem:[%s9] sm:$0x1]
      %v563 = vlaneseq
      %v564 = vshrl.u32 %v563, 7
      %v565 = vsub.s32 0, %v564
      %v566 = vrot.slane %v561, %v565
      %v568 = vmul.f32 %v560, %v566
      %v569 = vsel %vm41, %v568, 0.0
      %570 = vadd.xlane.f32.xlu0 %v569
      %v571 = vpop.xlane.xlu0 %570
      %v572 = vld [vmem:[#allocation8] sm:$0x1]
      %v574 = vlaneseq
      %v575 = vshrl.u32 %v574, 7
      %v576 = vsub.s32 0, %v575
      %v577 = vrot.slane %v572, %v576
      %v579 = vadd.f32 %v571, %v577
      %s580 = scalar_lea.vmem %s1, %s392
      %v581 = vld [vmem:[%s580] sm:$0x3]
      %v582 = vmul.f32 %v579, %v581
      %v583 = vld [vmem:[#allocation6] sm:$0x3]
      %585 = vset.pattern.permute.xlu0 0
      %586 = vperm.xlu0 %585, %v582
      %v587 = vpop.permute.xlu0 %586
      %v589 = vmul.f32 %v587, %v394
      %v590 = vadd.f32 %v583, %v589
      %591 = vst.msk [vmem:[#allocation6] sm:$0x3] %vm41, %v590
      %v592 = vld [vmem:[#allocation7] sm:$0x3]
      %v593 = vmul.f32 %v587, %v396
      %v594 = vadd.f32 %v592, %v593
      %595 = vst.msk [vmem:[#allocation7] sm:$0x3] %vm41, %v594
    $region57: #{sentence_attention_forward.3} parent=1 // loop_footer
      %s391 = sadd.s32 1, %s387
    $region58: #{sentence_attention_forward.3} parent=1 // loop_footer_branch
      %386 = sbr.rel target = $region54
    $region59: #{sentence_attention_forward.3} parent=1 // loop_exit
      _
    %v596 = vld [vmem:[#allocation6] sm:$0x3]
    %v597 = vld [vmem:[#allocation7] sm:$0x3]
    %599 = vrot.lane.b32.xlu0 %v597, 32
    %v600 = vpop.permute.xlu0 %599
    %vm602 = vcmask 261120
    %v603 = vsel %vm602, %v596, %v600
    %vm604 = vcmask 517120
    %605 = vst.msk [vmem:[#allocation9] sm:$0x3] %vm604, %v603
    // Predicated region
    $region60: #{sentence_attention_forward.3} parent=1 // pred_check
      _
    $region61: #{sentence_attention_forward.3} parent=1 // pred_check_branch
      %607 = sbr.rel (0) target = $region63
    $region62: #{sentence_attention_forward.3} parent=1 // pred_region
      %s609 = ssub.s32 32, 32
      %610 = vsyncadd [#allocation10], %s609
      %s612 = sshll.u32 [#allocation9], 4
      %s613 = int_to_ptr.vmem [resolvable:$true] %s612
      %615 = dma.vmem_to_hbm [thread:$0]  %s613, 32, %s11, [#allocation10]
    $region63: #{sentence_attention_forward.3} parent=1 // pred_fallthru
      _
    // Predicated region
    $region64: #{sentence_attention_forward.3} parent=1 // pred_check
      _
    $region65: #{sentence_attention_forward.3} parent=1 // pred_check_branch
      %617 = sbr.rel (0) target = $region67
    $region66: #{sentence_attention_forward.3} parent=1 // pred_region
      %618 = dma.done [#allocation10], 32
    $region67: #{sentence_attention_forward.3} parent=1 // pred_fallthru
      _
    %619 = vsyncpa [#allocation10], 1

</llo_original>
